<compile_context>
chip_gen: v7x
topology: tpu7x:2x2x1
jax: 0.10.0
libtpu: 0.0.40
codegen_flags: <defaults>
</compile_context>

<pallas_src>
import functools
import math

import jax
import jax.numpy as jnp
import numpy as np
from jax.experimental import pallas as pl
from jax.experimental.pallas import tpu as pltpu


_NEG_SLOPE = 0.2  # LeakyReLU(0.2) as in the module


def _round_up(x, m):
    return (x + m - 1) // m * m


# ----------------------------------------------------------------------------
# Fused Pallas kernel: feature build + 3x (1x1 conv) + activations
# ----------------------------------------------------------------------------
def _dist2logit_kernel(d0_ref, d1_ref, w1_ref, w2_ref, b2_ref, w3_ref, b3_ref,
                       o_ref, *, eps):
    d0 = d0_ref[...]                       # (1, C) f32, C pixels on lanes
    d1 = d1_ref[...]                       # (1, C) f32
    one = jnp.ones_like(d0)
    z = jnp.zeros_like(d0)

    # Ratio features via approx reciprocal (EUP slot ~free vs VALU divide).
    r01 = d0 * pl.reciprocal(d1 + eps, approx=True)
    r10 = d1 * pl.reciprocal(d0 + eps, approx=True)

    # 5 features + a ones-row (b1 folded into w1 column 5) + zero-pad to K=8.
    f = jnp.concatenate([d0, d1, d0 - d1, r01, r10, one, z, z],
                        axis=0).astype(jnp.bfloat16)            # (8, C) bf16

    # ---- layer 1: 1x1 conv 5->32 (+bias via ones-row), LeakyReLU in bf16 ---
    h1 = jnp.dot(w1_ref[...], f, preferred_element_type=jnp.float32)  # (32, C)
    h1 = h1.astype(jnp.bfloat16)
    h1 = jnp.maximum(h1, _NEG_SLOPE * h1)                             # bf16

    # ---- layer 2: 1x1 conv 32->32, bias + LeakyReLU in f32 -----------------
    h2 = jnp.dot(w2_ref[...], h1, preferred_element_type=jnp.float32)  # (32, C)
    h2 = h2 + b2_ref[...]                                              # (32,1) bcast
    h2 = jnp.maximum(h2, _NEG_SLOPE * h2)

    # ---- layer 3: 32->1 as VPU mul + XLU sublane reduction, sigmoid --------
    h3 = jnp.sum(h2 * w3_ref[...], axis=0, keepdims=True) + b3_ref[...]  # (1, C)
    o_ref[...] = pl.reciprocal(1.0 + jnp.exp(-h3), approx=True)


# ----------------------------------------------------------------------------
# Wrapper
# ----------------------------------------------------------------------------
def dist2logit_forward(params, d0, d1, eps=0.1, *, max_block_pixels=32768):
    assert d0.shape == d1.shape
    N, Cin, H, W = d0.shape
    assert Cin == 1
    P = N * H * W

    # Pixels-on-lanes layout; reshape is free (no HBM pad/copy).  Any ragged
    # last tile is masked by Pallas on load/store.
    d0f = d0.reshape(1, P).astype(jnp.float32)
    d1f = d1.reshape(1, P).astype(jnp.float32)

    # Tile: as large as allowed (amortizes per-step overhead), lane-aligned,
    # and >= 2 grid steps when P allows so both megacore TCs get work.
    C = min(int(max_block_pixels), max(128, _round_up(pl.cdiv(P, 2), 128)))
    R = pl.cdiv(P, C)

    kernel = functools.partial(_dist2logit_kernel, eps=float(eps))
    const2d = lambda i: (0, 0)   # weights: same block every step -> resident

    cost = pl.CostEstimate(
        flops=int(P) * (2 * (8 * 32 + 32 * 32 + 32) + 16),
        transcendentals=4 * int(P),          # 2 recips + exp + sigmoid recip
        bytes_accessed=12 * int(P),          # 2 f32 in, 1 f32 out per pixel
    )

    out = pl.pallas_call(
        kernel,
        out_shape=jax.ShapeDtypeStruct((1, P), jnp.float32),
        grid=(R,),
        in_specs=[
            pl.BlockSpec((1, C), lambda i: (0, i)),            # d0 tile
            pl.BlockSpec((1, C), lambda i: (0, i)),            # d1 tile
            pl.BlockSpec(params['w1'].shape, const2d),         # (32, 8) bf16
            pl.BlockSpec(params['w2'].shape, const2d),         # (32, 32) bf16
            pl.BlockSpec(params['b2'].shape, const2d),         # (32, 1) f32
            pl.BlockSpec(params['w3'].shape, const2d),         # (32, 1) f32
            pl.BlockSpec(params['b3'].shape, const2d),         # (1, 1) f32
        ],
        out_specs=pl.BlockSpec((1, C), lambda i: (0, i)),
        compiler_params=pltpu.CompilerParams(
            dimension_semantics=("parallel",),
            vmem_limit_bytes=48 * 1024 * 1024,
        ),
        cost_estimate=cost,
    )(d0f, d1f, params['w1'], params['w2'], params['b2'],
      params['w3'], params['b3'])

    return out.reshape(N, 1, H, W)


# ----------------------------------------------------------------------------
# Deterministic synthetic parameters (PyTorch Conv2d default-init shapes)
# ----------------------------------------------------------------------------
def build_params(chn_mid=32, seed=0):
    key = jax.random.PRNGKey(seed)
    ks = jax.random.split(key, 6)

    def u(k, shape, fan_in):
        bound = 1.0 / math.sqrt(fan_in)
        return jax.random.uniform(k, shape, jnp.float32, -bound, bound)

    w1 = u(ks[0], (chn_mid, 5), 5)          # Conv2d(5, 32, 1) weight (out,in)
    b1 = u(ks[1], (chn_mid, 1), 5)
    # Fold b1 into w1 as column 5 (feature row 5 is all-ones); zero-pad K 5->8.
    w1p = jnp.concatenate([w1, b1, jnp.zeros((chn_mid, 2), jnp.float32)],
                          axis=1)           # (32, 8)
    w2 = u(ks[2], (chn_mid, chn_mid), chn_mid)
    b2 = u(ks[3], (chn_mid, 1), chn_mid)
    w3 = u(ks[4], (chn_mid, 1), chn_mid)    # stored as a column (32, 1)
    b3 = u(ks[5], (1, 1), chn_mid)
    return dict(w1=w1p.astype(jnp.bfloat16),    # pre-cast MXU weights
                w2=w2.astype(jnp.bfloat16),
                b2=b2, w3=w3, b3=b3)


# ----------------------------------------------------------------------------
# Pure-JAX reference (f32) for a sanity tolerance check
# ----------------------------------------------------------------------------
def _reference(params, d0, d1, eps=0.1):
    f = jnp.concatenate(
        [d0, d1, d0 - d1, d0 / (d1 + eps), d1 / (d0 + eps)], axis=1)  # (N,5,H,W)
    w1full = params['w1'].astype(jnp.float32)
    w1, b1 = w1full[:, :5], w1full[:, 5]
    h = jnp.einsum('oc,nchw->nohw', w1, f) + b1.reshape(1, -1, 1, 1)
    h = jnp.maximum(h, _NEG_SLOPE * h)
    w2 = params['w2'].astype(jnp.float32)
    h = jnp.einsum('oc,nchw->nohw', w2, h) + params['b2'].reshape(1, -1, 1, 1)
    h = jnp.maximum(h, _NEG_SLOPE * h)
    h = jnp.einsum('oc,nchw->nohw', params['w3'].T, h) + params['b3'].reshape(1, 1, 1, 1)
    return jax.nn.sigmoid(h)


if __name__ == "__main__":
    key = jax.random.PRNGKey(0)
    k0, k1 = jax.random.split(key)
    # Small, module-consistent shapes: two single-channel "distance" maps.
    d0 = jax.random.uniform(k0, (2, 1, 16, 16), jnp.float32)
    d1 = jax.random.uniform(k1, (2, 1, 16, 16), jnp.float32)

    params = build_params(chn_mid=32)

    out = dist2logit_forward(params, d0, d1)
    out = jax.block_until_ready(out)

    assert out.shape == (2, 1, 16, 16), out.shape
    assert bool(jnp.all(jnp.isfinite(out)))
    assert bool(jnp.all((out >= 0.0) & (out <= 1.0)))

    ref = _reference(params, d0, d1)
    np.testing.assert_allclose(np.asarray(out), np.asarray(ref),
                               atol=5e-2, rtol=0)  # bf16 + approx-recip tolerance
    print("KERNEL_OK")
</pallas_src>

<mosaic_0001>
module attributes {stable_mosaic.version = 11 : i64} {
  func.func @_dist2logit_kernel(%arg0: i32, %arg1: memref<1x256xf32, #tpu.memory_space<vmem>>, %arg2: memref<1x256xf32, #tpu.memory_space<vmem>>, %arg3: memref<32x8xbf16, #tpu.memory_space<vmem>>, %arg4: memref<32x32xbf16, #tpu.memory_space<vmem>>, %arg5: memref<32x1xf32, #tpu.memory_space<vmem>>, %arg6: memref<32x1xf32, #tpu.memory_space<vmem>>, %arg7: memref<1x1xf32, #tpu.memory_space<vmem>>, %arg8: memref<1x256xf32, #tpu.memory_space<vmem>>) attributes {dimension_semantics = [#tpu.dimension_semantics<parallel>], iteration_bounds = array<i64: 2>, scalar_prefetch = 0 : i64, scratch_operands = 0 : i64, tpu.core_type = #tpu.core_type<tc>, window_params = [{transform_indices = @transform_0, window_bounds = array<i64: 1, 256>}, {transform_indices = @transform_1, window_bounds = array<i64: 1, 256>}, {pipeline_mode = #tpu.pipeline_mode<synchronous>, transform_indices = @transform_2, window_bounds = array<i64: 32, 8>}, {pipeline_mode = #tpu.pipeline_mode<synchronous>, transform_indices = @transform_3, window_bounds = array<i64: 32, 32>}, {pipeline_mode = #tpu.pipeline_mode<synchronous>, transform_indices = @transform_4, window_bounds = array<i64: 32, 1>}, {pipeline_mode = #tpu.pipeline_mode<synchronous>, transform_indices = @transform_5, window_bounds = array<i64: 32, 1>}, {pipeline_mode = #tpu.pipeline_mode<synchronous>, transform_indices = @transform_6, window_bounds = array<i64: 1, 1>}, {transform_indices = @transform_7, window_bounds = array<i64: 1, 256>}]} {
    %c0 = arith.constant 0 : index
    %c0_0 = arith.constant 0 : index
    %0 = vector.load %arg1[%c0, %c0_0] : memref<1x256xf32, #tpu.memory_space<vmem>>, vector<1x256xf32>
    %c0_1 = arith.constant 0 : index
    %c0_2 = arith.constant 0 : index
    %1 = vector.load %arg2[%c0_1, %c0_2] : memref<1x256xf32, #tpu.memory_space<vmem>>, vector<1x256xf32>
    %cst = arith.constant 1.000000e+00 : f32
    %2 = vector.broadcast %cst : f32 to vector<1x256xf32>
    %cst_3 = arith.constant 0.000000e+00 : f32
    %3 = vector.broadcast %cst_3 : f32 to vector<1x256xf32>
    %cst_4 = arith.constant 1.000000e-01 : f32
    %4 = vector.broadcast %cst_4 : f32 to vector<1x256xf32>
    %5 = arith.addf %1, %4 : vector<1x256xf32>
    %6 = tpu.reciprocal %5 {approx = true} : vector<1x256xf32> -> vector<1x256xf32>
    %7 = arith.mulf %0, %6 : vector<1x256xf32>
    %cst_5 = arith.constant 1.000000e-01 : f32
    %8 = vector.broadcast %cst_5 : f32 to vector<1x256xf32>
    %9 = arith.addf %0, %8 : vector<1x256xf32>
    %10 = tpu.reciprocal %9 {approx = true} : vector<1x256xf32> -> vector<1x256xf32>
    %11 = arith.mulf %1, %10 : vector<1x256xf32>
    %12 = arith.subf %0, %1 : vector<1x256xf32>
    %13 = tpu.concatenate %0, %1, %12, %7, %11, %2, %3, %3 in 0 : vector<1x256xf32>, vector<1x256xf32>, vector<1x256xf32>, vector<1x256xf32>, vector<1x256xf32>, vector<1x256xf32>, vector<1x256xf32>, vector<1x256xf32> -> vector<8x256xf32>
    %14 = arith.truncf %13 : vector<8x256xf32> to vector<8x256xbf16>
    %c0_6 = arith.constant 0 : index
    %c0_7 = arith.constant 0 : index
    %15 = vector.load %arg3[%c0_6, %c0_7] : memref<32x8xbf16, #tpu.memory_space<vmem>>, vector<32x8xbf16>
    %cst_8 = arith.constant dense<0.000000e+00> : vector<32x256xf32>
    %16 = tpu.matmul %15, %14, %cst_8 {dimension_numbers = #tpu.dot_dimension_numbers<[1], [0], [0], [1], [0, 0, 1, 1], [], []>} : vector<32x8xbf16>, vector<8x256xbf16>, vector<32x256xf32> -> vector<32x256xf32>
    %17 = arith.truncf %16 : vector<32x256xf32> to vector<32x256xbf16>
    %cst_9 = arith.constant 2.001950e-01 : bf16
    %18 = vector.broadcast %cst_9 : bf16 to vector<32x256xbf16>
    %19 = arith.mulf %18, %17 : vector<32x256xbf16>
    %20 = arith.maximumf %17, %19 : vector<32x256xbf16>
    %c0_10 = arith.constant 0 : index
    %c0_11 = arith.constant 0 : index
    %21 = vector.load %arg4[%c0_10, %c0_11] : memref<32x32xbf16, #tpu.memory_space<vmem>>, vector<32x32xbf16>
    %cst_12 = arith.constant dense<0.000000e+00> : vector<32x256xf32>
    %22 = tpu.matmul %21, %20, %cst_12 {dimension_numbers = #tpu.dot_dimension_numbers<[1], [0], [0], [1], [0, 0, 1, 1], [], []>} : vector<32x32xbf16>, vector<32x256xbf16>, vector<32x256xf32> -> vector<32x256xf32>
    %c0_13 = arith.constant 0 : index
    %c0_14 = arith.constant 0 : index
    %23 = vector.load %arg5[%c0_13, %c0_14] : memref<32x1xf32, #tpu.memory_space<vmem>>, vector<32x1xf32>
    %24 = vector.broadcast %23 : vector<32x1xf32> to vector<32x256xf32>
    %25 = arith.addf %22, %24 : vector<32x256xf32>
    %cst_15 = arith.constant 2.000000e-01 : f32
    %26 = vector.broadcast %cst_15 : f32 to vector<32x256xf32>
    %27 = arith.mulf %26, %25 : vector<32x256xf32>
    %28 = arith.maximumf %25, %27 : vector<32x256xf32>
    %c0_16 = arith.constant 0 : index
    %c0_17 = arith.constant 0 : index
    %29 = vector.load %arg6[%c0_16, %c0_17] : memref<32x1xf32, #tpu.memory_space<vmem>>, vector<32x1xf32>
    %30 = vector.broadcast %29 : vector<32x1xf32> to vector<32x256xf32>
    %31 = arith.mulf %28, %30 : vector<32x256xf32>
    %cst_18 = arith.constant dense<0.000000e+00> : vector<256xf32>
    %32 = vector.multi_reduction <add>, %31, %cst_18 [0] : vector<32x256xf32> to vector<256xf32>
    %33 = vector.shape_cast %32 : vector<256xf32> to vector<1x256xf32>
    %c0_19 = arith.constant 0 : index
    %c0_20 = arith.constant 0 : index
    %34 = vector.load %arg7[%c0_19, %c0_20] : memref<1x1xf32, #tpu.memory_space<vmem>>, vector<1x1xf32>
    %35 = vector.broadcast %34 : vector<1x1xf32> to vector<1x256xf32>
    %36 = arith.addf %33, %35 : vector<1x256xf32>
    %cst_21 = arith.constant 0.000000e+00 : f32
    %37 = vector.broadcast %cst_21 : f32 to vector<1x256xf32>
    %38 = arith.subf %37, %36 : vector<1x256xf32>
    %39 = math.exp %38 : vector<1x256xf32>
    %cst_22 = arith.constant 1.000000e+00 : f32
    %40 = vector.broadcast %cst_22 : f32 to vector<1x256xf32>
    %41 = arith.addf %40, %39 : vector<1x256xf32>
    %42 = tpu.reciprocal %41 {approx = true} : vector<1x256xf32> -> vector<1x256xf32>
    %c0_23 = arith.constant 0 : index
    %c0_24 = arith.constant 0 : index
    %43 = vector.load %arg8[%c0_23, %c0_24] : memref<1x256xf32, #tpu.memory_space<vmem>>, vector<1x256xf32>
    tpu.vector_store %arg8[%c0_23, %c0_24], %42 {strides = array<i32>} : memref<1x256xf32, #tpu.memory_space<vmem>>, vector<1x256xf32>,
    return
  }
  func.func @transform_0(%arg0: i32) -> (i32, i32) {
    %c0_i32 = arith.constant 0 : i32
    %c0_i32_0 = arith.constant 0 : i32
    return %c0_i32, %arg0 : i32, i32
  }
  func.func @transform_1(%arg0: i32) -> (i32, i32) {
    %c0_i32 = arith.constant 0 : i32
    %c0_i32_0 = arith.constant 0 : i32
    return %c0_i32, %arg0 : i32, i32
  }
  func.func @transform_2(%arg0: i32) -> (i32, i32) {
    %c0_i32 = arith.constant 0 : i32
    %c0_i32_0 = arith.constant 0 : i32
    %c0_i32_1 = arith.constant 0 : i32
    return %c0_i32, %c0_i32_0 : i32, i32
  }
  func.func @transform_3(%arg0: i32) -> (i32, i32) {
    %c0_i32 = arith.constant 0 : i32
    %c0_i32_0 = arith.constant 0 : i32
    %c0_i32_1 = arith.constant 0 : i32
    return %c0_i32, %c0_i32_0 : i32, i32
  }
  func.func @transform_4(%arg0: i32) -> (i32, i32) {
    %c0_i32 = arith.constant 0 : i32
    %c0_i32_0 = arith.constant 0 : i32
    %c0_i32_1 = arith.constant 0 : i32
    return %c0_i32, %c0_i32_0 : i32, i32
  }
  func.func @transform_5(%arg0: i32) -> (i32, i32) {
    %c0_i32 = arith.constant 0 : i32
    %c0_i32_0 = arith.constant 0 : i32
    %c0_i32_1 = arith.constant 0 : i32
    return %c0_i32, %c0_i32_0 : i32, i32
  }
  func.func @transform_6(%arg0: i32) -> (i32, i32) {
    %c0_i32 = arith.constant 0 : i32
    %c0_i32_0 = arith.constant 0 : i32
    %c0_i32_1 = arith.constant 0 : i32
    return %c0_i32, %c0_i32_0 : i32, i32
  }
  func.func @transform_7(%arg0: i32) -> (i32, i32) {
    %c0_i32 = arith.constant 0 : i32
    %c0_i32_0 = arith.constant 0 : i32
    return %c0_i32, %arg0 : i32, i32
  }
}

</mosaic_0001>

<llo_original>
// kernel: tpu_custom_call.1
$region0: #{tpu_custom_call.1}
  #allocation0 [shape = 'u32[]', space=smem, size = 0x4, offset = 0x4, fixed_abs, tag = 'smem constant byte address 0x4 - core index']
  #allocation1 [shape = 'u32[144,128]{1,0:T(1,128)}', space=vmem, size = 0x12000, scoped, tag = 'internal scratch']
  #allocation2 [shape = 'f32[1,1]{1,0:T(1,128)S(1)}', space=vmem, size = 0x200, scoped, tag = 'scoped memory for tpu_custom_call.1']
  %s0 = inlined_call_operand.vmem [shape: f32[1,512], index: 0, kind: input, shape index: {}]
  %s1 = inlined_call_operand.vmem [shape: f32[1,512], index: 1, kind: input, shape index: {}]
  %s2 = inlined_call_operand.vmem [shape: bf16[32,8], index: 2, kind: input, shape index: {}]
  %s3 = inlined_call_operand.vmem [shape: bf16[32,32], index: 3, kind: input, shape index: {}]
  %s4 = inlined_call_operand.vmem [shape: f32[32,1], index: 4, kind: input, shape index: {}]
  %s5 = inlined_call_operand.vmem [shape: f32[32,1], index: 5, kind: input, shape index: {}]
  %s6 = inlined_call_operand.<no memory space> [shape: f32[1,1], index: 6, kind: input, shape index: {}]
  %s7 = inlined_call_operand.hbm [shape: f32[1,512], index: 7, kind: output, shape index: {}]
  %s8 = sld [smem:[#allocation0]]
  $region61: #{tpu_custom_call.1} parent=0
    _
  %s10 = ssub.s32 1, %s8
  %s11 = scalar_select 0, %s10, %s8
  %v12 = vstv %s6
  %13 = vst [vmem:[#allocation2] sm:$0x1] %v12
  $region1: #{tpu_custom_call.1} parent=0
    #allocation3 [shape = 'u8[2048]{0}', space=vmem, size = 0x800, scoped, tag = 'output window, operand 0']
    #allocation4 [shape = 's32[2]{0}', space=sflag, size = 0x8, scoped, tag = 'scoped memory for tpu_custom_call.1']
    %14 = vsyncpa [#allocation4], 0
    %s15 = scalar_lea.sflag [#allocation4], 1
    %16 = vsyncpa %s15, 0
    loop: start=0, step=1, limit=4
    $region2: #{tpu_custom_call.1} parent=1 // loop_pre_header
      _
    $region3: #{tpu_custom_call.1} parent=1 // loop_header
      %s18 = sphi 0, %s22
      %p19 = scmp.ge.s32.totalorder %s18, 4
      %s28 = sphi 0, %s30
      %s31 = sphi 0, %s28
      %s32 = sphi 0, %s31
      %s48 = sphi 0, %s32
      %s54 = sphi 0, %s56
      %s57 = sphi 0, %s54
      %s58 = sphi 0, %s57
      %s74 = sphi 0, %s58
      %s78 = sphi 0, %s78
      %s80 = sphi 0, %s78
      %s81 = sphi 0, %s80
      %s95 = sphi 0, %s81
      %s99 = sphi 0, %s99
      %s101 = sphi 0, %s99
      %s102 = sphi 0, %s101
      %s116 = sphi 0, %s102
      %s120 = sphi 0, %s120
      %s122 = sphi 0, %s120
      %s123 = sphi 0, %s122
      %s137 = sphi 0, %s123
      %s141 = sphi 0, %s141
      %s143 = sphi 0, %s141
      %s144 = sphi 0, %s143
      %s158 = sphi 0, %s144
      %s162 = sphi 0, %s162
      %s164 = sphi 0, %s162
      %s165 = sphi 0, %s164
      %s179 = sphi 0, %s165
      %s185 = sphi 0, %s187
      %s188 = sphi 0, %s185
      %s189 = sphi 0, %s188
      %s205 = sphi 0, %s189
    $region4: #{tpu_custom_call.1} parent=1 // loop_header_branch
      %21 = sbr.rel (%p19) target = $region8
    $region5: #{tpu_custom_call.1} parent=1 // loop_body
      %s23 = ssub.s32 %s18, 1
      %s24 = ssub.s32 %s18, 2
      %s25 = sadd.s32 %s18, 1
      %s26 = ssub.s32 %s18, %s25
      %p27 = scmp.eq.s32.totalorder %s26, 0
      %s29 = sadd.s32 %s28, 1
      %s30 = scalar_select %p27, %s28, %s29
      %p33 = pneg %p27
      %p34 = scmp.eq.s32.totalorder %s18, 1
      %p35 = por %p33, %p34
      %p36 = scmp.ne.s32.totalorder %s28, %s31
      %p37 = scmp.eq.s32.totalorder %s18, 0
      %p38 = por %p36, %p37
      %p39 = scmp.ne.s32.totalorder %s28, %s31
      %p40 = scmp.eq.s32.totalorder %s23, 1
      %p41 = por %p39, %p40
      %p42 = scmp.ne.s32.totalorder %s31, %s32
      %p43 = scmp.eq.s32.totalorder %s23, 0
      %p44 = por %p42, %p43
      %p45 = scmp.ne.s32.totalorder %s31, %s32
      %p46 = scmp.eq.s32.totalorder %s24, 1
      %p47 = por %p45, %p46
      %p49 = scmp.ne.s32.totalorder %s32, %s48
      %p50 = scmp.eq.s32.totalorder %s24, 0
      %p51 = por %p49, %p50
      %s52 = ssub.s32 %s18, %s25
      %p53 = scmp.eq.s32.totalorder %s52, 0
      %s55 = sadd.s32 %s54, 1
      %s56 = scalar_select %p53, %s54, %s55
      %p59 = pneg %p53
      %p60 = scmp.eq.s32.totalorder %s18, 1
      %p61 = por %p59, %p60
      %p62 = scmp.ne.s32.totalorder %s54, %s57
      %p63 = scmp.eq.s32.totalorder %s18, 0
      %p64 = por %p62, %p63
      %p65 = scmp.ne.s32.totalorder %s54, %s57
      %p66 = scmp.eq.s32.totalorder %s23, 1
      %p67 = por %p65, %p66
      %p68 = scmp.ne.s32.totalorder %s57, %s58
      %p69 = scmp.eq.s32.totalorder %s23, 0
      %p70 = por %p68, %p69
      %p71 = scmp.ne.s32.totalorder %s57, %s58
      %p72 = scmp.eq.s32.totalorder %s24, 1
      %p73 = por %p71, %p72
      %p75 = scmp.ne.s32.totalorder %s58, %s74
      %p76 = scmp.eq.s32.totalorder %s24, 0
      %p77 = por %p75, %p76
      %s79 = sadd.s32 %s78, 1
      %p82 = scmp.eq.s32.totalorder %s18, 1
      %p83 = scmp.ne.s32.totalorder %s78, %s80
      %p84 = scmp.eq.s32.totalorder %s18, 0
      %p85 = por %p83, %p84
      %p86 = scmp.ne.s32.totalorder %s78, %s80
      %p87 = scmp.eq.s32.totalorder %s23, 1
      %p88 = por %p86, %p87
      %p89 = scmp.ne.s32.totalorder %s80, %s81
      %p90 = scmp.eq.s32.totalorder %s23, 0
      %p91 = por %p89, %p90
      %p92 = scmp.ne.s32.totalorder %s80, %s81
      %p93 = scmp.eq.s32.totalorder %s24, 1
      %p94 = por %p92, %p93
      %p96 = scmp.ne.s32.totalorder %s81, %s95
      %p97 = scmp.eq.s32.totalorder %s24, 0
      %p98 = por %p96, %p97
      %s100 = sadd.s32 %s99, 1
      %p103 = scmp.eq.s32.totalorder %s18, 1
      %p104 = scmp.ne.s32.totalorder %s99, %s101
      %p105 = scmp.eq.s32.totalorder %s18, 0
      %p106 = por %p104, %p105
      %p107 = scmp.ne.s32.totalorder %s99, %s101
      %p108 = scmp.eq.s32.totalorder %s23, 1
      %p109 = por %p107, %p108
      %p110 = scmp.ne.s32.totalorder %s101, %s102
      %p111 = scmp.eq.s32.totalorder %s23, 0
      %p112 = por %p110, %p111
      %p113 = scmp.ne.s32.totalorder %s101, %s102
      %p114 = scmp.eq.s32.totalorder %s24, 1
      %p115 = por %p113, %p114
      %p117 = scmp.ne.s32.totalorder %s102, %s116
      %p118 = scmp.eq.s32.totalorder %s24, 0
      %p119 = por %p117, %p118
      %s121 = sadd.s32 %s120, 1
      %p124 = scmp.eq.s32.totalorder %s18, 1
      %p125 = scmp.ne.s32.totalorder %s120, %s122
      %p126 = scmp.eq.s32.totalorder %s18, 0
      %p127 = por %p125, %p126
      %p128 = scmp.ne.s32.totalorder %s120, %s122
      %p129 = scmp.eq.s32.totalorder %s23, 1
      %p130 = por %p128, %p129
      %p131 = scmp.ne.s32.totalorder %s122, %s123
      %p132 = scmp.eq.s32.totalorder %s23, 0
      %p133 = por %p131, %p132
      %p134 = scmp.ne.s32.totalorder %s122, %s123
      %p135 = scmp.eq.s32.totalorder %s24, 1
      %p136 = por %p134, %p135
      %p138 = scmp.ne.s32.totalorder %s123, %s137
      %p139 = scmp.eq.s32.totalorder %s24, 0
      %p140 = por %p138, %p139
      %s142 = sadd.s32 %s141, 1
      %p145 = scmp.eq.s32.totalorder %s18, 1
      %p146 = scmp.ne.s32.totalorder %s141, %s143
      %p147 = scmp.eq.s32.totalorder %s18, 0
      %p148 = por %p146, %p147
      %p149 = scmp.ne.s32.totalorder %s141, %s143
      %p150 = scmp.eq.s32.totalorder %s23, 1
      %p151 = por %p149, %p150
      %p152 = scmp.ne.s32.totalorder %s143, %s144
      %p153 = scmp.eq.s32.totalorder %s23, 0
      %p154 = por %p152, %p153
      %p155 = scmp.ne.s32.totalorder %s143, %s144
      %p156 = scmp.eq.s32.totalorder %s24, 1
      %p157 = por %p155, %p156
      %p159 = scmp.ne.s32.totalorder %s144, %s158
      %p160 = scmp.eq.s32.totalorder %s24, 0
      %p161 = por %p159, %p160
      %s163 = sadd.s32 %s162, 1
      %p166 = scmp.eq.s32.totalorder %s18, 1
      %p167 = scmp.ne.s32.totalorder %s162, %s164
      %p168 = scmp.eq.s32.totalorder %s18, 0
      %p169 = por %p167, %p168
      %p170 = scmp.ne.s32.totalorder %s162, %s164
      %p171 = scmp.eq.s32.totalorder %s23, 1
      %p172 = por %p170, %p171
      %p173 = scmp.ne.s32.totalorder %s164, %s165
      %p174 = scmp.eq.s32.totalorder %s23, 0
      %p175 = por %p173, %p174
      %p176 = scmp.ne.s32.totalorder %s164, %s165
      %p177 = scmp.eq.s32.totalorder %s24, 1
      %p178 = por %p176, %p177
      %p180 = scmp.ne.s32.totalorder %s165, %s179
      %p181 = scmp.eq.s32.totalorder %s24, 0
      %p182 = por %p180, %p181
      %s183 = ssub.s32 %s18, %s25
      %p184 = scmp.eq.s32.totalorder %s183, 0
      %s186 = sadd.s32 %s185, 1
      %s187 = scalar_select %p184, %s185, %s186
      %p190 = pneg %p184
      %p191 = scmp.eq.s32.totalorder %s18, 1
      %p192 = por %p190, %p191
      %p193 = scmp.ne.s32.totalorder %s185, %s188
      %p194 = scmp.eq.s32.totalorder %s18, 0
      %p195 = por %p193, %p194
      %p196 = scmp.ne.s32.totalorder %s185, %s188
      %p197 = scmp.eq.s32.totalorder %s23, 1
      %p198 = por %p196, %p197
      %p199 = scmp.ne.s32.totalorder %s188, %s189
      %p200 = scmp.eq.s32.totalorder %s23, 0
      %p201 = por %p199, %p200
      %p202 = scmp.ne.s32.totalorder %s188, %s189
      %p203 = scmp.eq.s32.totalorder %s24, 1
      %p204 = por %p202, %p203
      %p206 = scmp.ne.s32.totalorder %s189, %s205
      %p207 = scmp.eq.s32.totalorder %s24, 0
      %p208 = por %p206, %p207
      %p209 = scmp.le.s32.totalorder 1, %s18
      %p210 = scmp.lt.s32.totalorder %s18, 3
      %p211 = pnand %p209, %p210
      %p212 = pneg %p211
      // Predicated region
      $region9: #{tpu_custom_call.1} parent=5 // pred_check
        _
      $region10: #{tpu_custom_call.1} parent=5 // pred_check_branch
        %214 = sbr.rel (%p211) target = $region12
      $region11: #{tpu_custom_call.1} parent=5 // pred_region
        %s215 = ssub.s32 %s18, 1
        // Predicated region
        $region13: #{tpu_custom_call.1} parent=11 // pred_check
          %p216 = pneg %p91
        $region14: #{tpu_custom_call.1} parent=11 // pred_check_branch
          %218 = sbr.rel (%p216) target = $region16
        $region15: #{tpu_custom_call.1} parent=11 // pred_region
          _
        $region16: #{tpu_custom_call.1} parent=11 // pred_fallthru
          _
        // Predicated region
        $region17: #{tpu_custom_call.1} parent=11 // pred_check
          %p219 = pneg %p112
        $region18: #{tpu_custom_call.1} parent=11 // pred_check_branch
          %221 = sbr.rel (%p219) target = $region20
        $region19: #{tpu_custom_call.1} parent=11 // pred_region
          _
        $region20: #{tpu_custom_call.1} parent=11 // pred_fallthru
          _
        // Predicated region
        $region21: #{tpu_custom_call.1} parent=11 // pred_check
          %p222 = pneg %p133
        $region22: #{tpu_custom_call.1} parent=11 // pred_check_branch
          %224 = sbr.rel (%p222) target = $region24
        $region23: #{tpu_custom_call.1} parent=11 // pred_region
          _
        $region24: #{tpu_custom_call.1} parent=11 // pred_fallthru
          _
        // Predicated region
        $region25: #{tpu_custom_call.1} parent=11 // pred_check
          %p225 = pneg %p154
        $region26: #{tpu_custom_call.1} parent=11 // pred_check_branch
          %227 = sbr.rel (%p225) target = $region28
        $region27: #{tpu_custom_call.1} parent=11 // pred_region
          _
        $region28: #{tpu_custom_call.1} parent=11 // pred_fallthru
          _
        // Predicated region
        $region29: #{tpu_custom_call.1} parent=11 // pred_check
          %p228 = pneg %p175
        $region30: #{tpu_custom_call.1} parent=11 // pred_check_branch
          %230 = sbr.rel (%p228) target = $region32
        $region31: #{tpu_custom_call.1} parent=11 // pred_region
          _
        $region32: #{tpu_custom_call.1} parent=11 // pred_fallthru
          _
      $region12: #{tpu_custom_call.1} parent=5 // pred_fallthru
        _
      %p231 = scmp.lt.s32.totalorder %s18, 2
      // Predicated region
      $region33: #{tpu_custom_call.1} parent=5 // pred_check
        %p232 = pneg %p231
      $region34: #{tpu_custom_call.1} parent=5 // pred_check_branch
        %234 = sbr.rel (%p232) target = $region36
      $region35: #{tpu_custom_call.1} parent=5 // pred_region
        // Predicated region
        $region37: #{tpu_custom_call.1} parent=35 // pred_check
          %p235 = pneg %p38
        $region38: #{tpu_custom_call.1} parent=35 // pred_check_branch
          %237 = sbr.rel (%p235) target = $region40
        $region39: #{tpu_custom_call.1} parent=35 // pred_region
          %s238 = smul.u32 2, %s18
          %p239 = scmp.lt.s32.totalorder %s238, 3
          %s240 = scalar_select %p239, %s238, 3
          %s241 = scalar_lea.vmem %s0, %s240
          %s242 = smul.u32 2, %s18
        $region40: #{tpu_custom_call.1} parent=35 // pred_fallthru
          _
        // Predicated region
        $region41: #{tpu_custom_call.1} parent=35 // pred_check
          %p243 = pneg %p64
        $region42: #{tpu_custom_call.1} parent=35 // pred_check_branch
          %245 = sbr.rel (%p243) target = $region44
        $region43: #{tpu_custom_call.1} parent=35 // pred_region
          %s246 = smul.u32 2, %s18
          %p247 = scmp.lt.s32.totalorder %s246, 3
          %s248 = scalar_select %p247, %s246, 3
          %s249 = scalar_lea.vmem %s1, %s248
          %s250 = smul.u32 2, %s18
        $region44: #{tpu_custom_call.1} parent=35 // pred_fallthru
          _
      $region36: #{tpu_custom_call.1} parent=5 // pred_fallthru
        _
      %p251 = scmp.le.s32.totalorder 1, %s18
      %p252 = scmp.lt.s32.totalorder %s18, 3
      %p253 = pnand %p251, %p252
      %p254 = pneg %p253
      // Predicated region
      $region45: #{tpu_custom_call.1} parent=5 // pred_check
        _
      $region46: #{tpu_custom_call.1} parent=5 // pred_check_branch
        %256 = sbr.rel (%p253) target = $region48
      $region47: #{tpu_custom_call.1} parent=5 // pred_region
        %s257 = ssub.s32 %s18, 1
        %s258 = smul.u32 2, %s23
        %p259 = scmp.lt.s32.totalorder %s258, 3
        %s260 = scalar_select %p259, %s258, 3
        %s261 = scalar_lea.vmem %s0, %s260
        %p262 = pneg %p44
        %p263 = pneg %p41
        %s264 = smul.u32 2, %s23
        %p265 = scmp.lt.s32.totalorder %s264, 3
        %s266 = scalar_select %p265, %s264, 3
        %s267 = scalar_lea.vmem %s1, %s266
        %p268 = pneg %p70
        %p269 = pneg %p67
        %p270 = pneg %p91
        %p271 = pneg %p88
        %p272 = pneg %p112
        %p273 = pneg %p109
        %p274 = pneg %p133
        %p275 = pneg %p130
        %p276 = pneg %p154
        %p277 = pneg %p151
        %p278 = pneg %p175
        %p279 = pneg %p172
        %p280 = pneg %p201
        %p281 = pneg %p198
        %s282 = sand.u32 %s188, 1
        %s283 = scalar_lea.sflag [#allocation4], %s282
        %s284 = sand.u32 %s188, 1
        %s285 = smul.addr %s284, 2
        %s286 = scalar_lea.vmem [#allocation3], %s285
        %s287 = smul.u32 2, %s23
        %p288 = scmp.lt.s32.totalorder %s287, 3
        %s289 = scalar_select %p288, %s287, 3
        %s290 = scalar_lea.vmem %s0, %s289
        %s291 = smul.u32 2, %s23
        %s292 = smul.u32 2, %s23
        %p293 = scmp.lt.s32.totalorder %s292, 3
        %s294 = scalar_select %p293, %s292, 3
        %s295 = scalar_lea.vmem %s1, %s294
        %s296 = smul.u32 2, %s23
        %s297 = smul.u32 2, %s23
        %v300 = vld [vmem:[%s290] sm:$0x3]
        %v301 = vld [vmem:[%s295] sm:$0x3]
        %v302 = vadd.f32 %v301, 0.1
        %v303 = vrcp.pop %v302
        %v304 = vmul.f32 %v300, %v303
        %v305 = vadd.f32 %v300, 0.1
        %v306 = vrcp.pop %v305
        %v307 = vmul.f32 %v301, %v306
        %v308 = vsub.f32 %v300, %v301
        %v310 = vlaneseq
        %v311 = vshrl.u32 %v310, 7
        %v312 = vsub.s32 0, %v311
        %v313 = vrot.slane %v300, %v312
        %v314 = vlaneseq
        %v315 = vshrl.u32 %v314, 7
        %v316 = vsub.s32 1, %v315
        %v317 = vrot.slane %v300, %v316
        %v321 = vlaneseq
        %v322 = vshrl.u32 %v321, 7
        %v323 = vsub.s32 0, %v322
        %v324 = vrot.slane %v301, %v323
        %v325 = vlaneseq
        %v326 = vshrl.u32 %v325, 7
        %v327 = vsub.s32 1, %v326
        %v328 = vrot.slane %v301, %v327
        %v332 = vlaneseq
        %v333 = vshrl.u32 %v332, 7
        %v334 = vsub.s32 0, %v333
        %v335 = vrot.slane %v308, %v334
        %v336 = vlaneseq
        %v337 = vshrl.u32 %v336, 7
        %v338 = vsub.s32 1, %v337
        %v339 = vrot.slane %v308, %v338
        %v343 = vlaneseq
        %v344 = vshrl.u32 %v343, 7
        %v345 = vsub.s32 0, %v344
        %v346 = vrot.slane %v304, %v345
        %v347 = vlaneseq
        %v348 = vshrl.u32 %v347, 7
        %v349 = vsub.s32 1, %v348
        %v350 = vrot.slane %v304, %v349
        %v354 = vlaneseq
        %v355 = vshrl.u32 %v354, 7
        %v356 = vsub.s32 0, %v355
        %v357 = vrot.slane %v307, %v356
        %v358 = vlaneseq
        %v359 = vshrl.u32 %v358, 7
        %v360 = vsub.s32 1, %v359
        %v361 = vrot.slane %v307, %v360
        %vm364 = vcmask 1040384
        %v365 = vsel %vm364, %v313, %v324
        %v366 = vsel %vm364, %v317, %v328
        %vm367 = vcmask 1041408
        %v368 = vsel %vm367, %v365, %v335
        %v369 = vsel %vm367, %v366, %v339
        %vm370 = vcmask 1042432
        %v371 = vsel %vm370, %v368, %v346
        %v372 = vsel %vm370, %v369, %v350
        %vm373 = vcmask 1043456
        %v374 = vsel %vm373, %v371, %v357
        %v375 = vsel %vm373, %v372, %v361
        %vm376 = vcmask 1044480
        %v377 = vsel %vm376, %v374, 1.0
        %v378 = vsel %vm376, %v375, 1.0
        %vm379 = vcmask 1045504
        %v380 = vsel %vm379, %v377, 0.0
        %v381 = vsel %vm379, %v378, 0.0
        %vm382 = vcmask 1046528
        %v383 = vsel %vm382, %v380, 0.0
        %v384 = vsel %vm382, %v381, 0.0
        %v385 = vpack.c.bf16 %v383, %v383
        %v386 = vpack.c.bf16 %v384, %v384
        %v387 = vld [vmem:[%s2] sm:$0xf]
        %v388 = vld [vmem:[%s2 + $0x4] sm:$0xf]
        %v389 = vld [vmem:[%s2 + $0x8] sm:$0xf]
        %v390 = vld [vmem:[%s2 + $0xc] sm:$0xf]
        %v395 = vunpack.c.l.b16 %v387
        %v396 = vunpack.c.l.b16 %v388
        %v397 = vunpack.c.l.b16 %v389
        %v398 = vunpack.c.l.b16 %v390
        %v399 = vpack.c.b16 %v396, %v395
        %v400 = vpack.c.b16 %v398, %v397
        %vm401 = vcmask 64512
        %v403 = vsel %vm401, %v399, 0
        %v406 = vsel %vm401, %v400, 0
        %v409 = vsel %vm373, %v385, 0
        %v412 = vsel %vm373, %v386, 0
        %414 = vmatprep.subr.bf16.mxu0 %v412
        %415 = vmatpush1.bf16.msra.mxu0 %v409
        %416 = vmatprep.subr.bf16.mxu0 0
        %417 = vmatpush1.bf16.msra.mxu0 0
        %418 = vmatprep.subr.bf16.mxu0 0
        %419 = vmatpush1.bf16.msra.mxu0 0
        %420 = vmatprep.subr.bf16.mxu0 0
        %421 = vmatpush1.bf16.msra.mxu0 0
        %422 = vmatprep.subr.bf16.mxu0 0
        %423 = vmatpush1.bf16.msra.mxu0 0
        %424 = vmatprep.subr.bf16.mxu0 0
        %425 = vmatpush1.bf16.msra.mxu0 0
        %426 = vmatprep.subr.bf16.mxu0 0
        %427 = vmatpush1.bf16.msra.mxu0 0
        %428 = vmatprep.subr.bf16.mxu0 0
        %429 = vmatpush1.bf16.msra.mxu0 0
        %430 = vmatprep.subr.bf16.mxu0 0
        %431 = vmatpush1.bf16.msra.mxu0 0
        %432 = vmatprep.subr.bf16.mxu0 0
        %433 = vmatpush1.bf16.msra.mxu0 0
        %434 = vmatprep.subr.bf16.mxu0 0
        %435 = vmatpush1.bf16.msra.mxu0 0
        %436 = vmatprep.subr.bf16.mxu0 0
        %437 = vmatpush1.bf16.msra.mxu0 0
        %438 = vmatprep.subr.bf16.mxu0 0
        %439 = vmatpush1.bf16.msra.mxu0 0
        %440 = vmatprep.subr.bf16.mxu0 0
        %441 = vmatpush1.bf16.msra.mxu0 0
        %442 = vmatprep.subr.bf16.mxu0 0
        %443 = vmatpush1.bf16.msra.mxu0 0
        %444 = vmatprep.subr.bf16.mxu0 0
        %445 = vmatpush1.bf16.msra.mxu0 0
        %446 = vmatprep.mubr.bf16.mxu0 0
        %447 = vmatmul.mubr.bf16.gmra.mrb[0].mxu0 %v403
        %v448 = vpop.f32.mrb[0].mxu0
        %v449 = vadd.f32 0.0, %v448
        %v450 = vpop.f32.mrb[0].mxu0
        %v451 = vadd.f32 0.0, %v450
        %v452 = vpop.f32.mrb[0].mxu0
        %v453 = vadd.f32 0.0, %v452
        %v454 = vpop.f32.mrb[0].mxu0
        %v455 = vadd.f32 0.0, %v454
        %456 = vmatprep.mubr.bf16.mxu0 0
        %457 = vmatmul.mubr.bf16.gmra.mrb[0].mxu0 %v406
        %v458 = vpop.f32.mrb[0].mxu0
        %v459 = vadd.f32 0.0, %v458
        %v460 = vpop.f32.mrb[0].mxu0
        %v461 = vadd.f32 0.0, %v460
        %v462 = vpop.f32.mrb[0].mxu0
        %v463 = vadd.f32 0.0, %v462
        %v464 = vpop.f32.mrb[0].mxu0
        %v465 = vadd.f32 0.0, %v464
        %466 = vdwg.mxu0
        %v467 = vpack.c.bf16 %v453, %v449
        %v468 = vpack.c.bf16 %v455, %v451
        %v469 = vpack.c.bf16 %v463, %v459
        %v470 = vpack.c.bf16 %v465, %v461
        %v471 = vmul.bf16 %v467, 1045249613
        %v472 = vmul.bf16 %v468, 1045249613
        %v473 = vmul.bf16 %v469, 1045249613
        %v474 = vmul.bf16 %v470, 1045249613
        %v475 = vmax.bf16 %v467, %v471
        %v476 = vmax.bf16 %v468, %v472
        %v477 = vmax.bf16 %v469, %v473
        %v478 = vmax.bf16 %v470, %v474
        %v479 = vld [vmem:[%s3] sm:$0xf]
        %v480 = vld [vmem:[%s3 + $0x4] sm:$0xf]
        %v481 = vld [vmem:[%s3 + $0x8] sm:$0xf]
        %v482 = vld [vmem:[%s3 + $0xc] sm:$0xf]
        %v483 = vld [vmem:[%s4] sm:$0xff]
        %v484 = vld [vmem:[%s4 + $0x8] sm:$0xff]
        %v485 = vld [vmem:[%s4 + $0x10] sm:$0xff]
        %v486 = vld [vmem:[%s4 + $0x18] sm:$0xff]
        %488 = vset.pattern.permute.xlu0 0
        %489 = vperm.xlu0 %488, %v483
        %v490 = vpop.permute.xlu0 %489
        %493 = vset.pattern.permute.xlu0 0
        %494 = vperm.xlu0 %493, %v484
        %v495 = vpop.permute.xlu0 %494
        %498 = vset.pattern.permute.xlu0 0
        %499 = vperm.xlu0 %498, %v485
        %v500 = vpop.permute.xlu0 %499
        %503 = vset.pattern.permute.xlu0 0
        %504 = vperm.xlu0 %503, %v486
        %v505 = vpop.permute.xlu0 %504
        %v511 = vunpack.c.l.b16 %v479
        %v512 = vunpack.c.l.b16 %v480
        %v513 = vunpack.c.l.b16 %v481
        %v514 = vunpack.c.l.b16 %v482
        %v515 = vpack.c.b16 %v512, %v511
        %v516 = vpack.c.b16 %v514, %v513
        %vm517 = vcmask 261120
        %v519 = vsel %vm517, %v515, 0
        %v522 = vsel %vm517, %v516, 0
        %524 = vmatprep.subr.bf16.mxu0 %v476
        %525 = vmatpush1.bf16.msra.mxu0 %v475
        %526 = vmatprep.subr.bf16.mxu0 %v478
        %527 = vmatpush1.bf16.msra.mxu0 %v477
        %528 = vmatprep.subr.bf16.mxu0 0
        %529 = vmatpush1.bf16.msra.mxu0 0
        %530 = vmatprep.subr.bf16.mxu0 0
        %531 = vmatpush1.bf16.msra.mxu0 0
        %532 = vmatprep.subr.bf16.mxu0 0
        %533 = vmatpush1.bf16.msra.mxu0 0
        %534 = vmatprep.subr.bf16.mxu0 0
        %535 = vmatpush1.bf16.msra.mxu0 0
        %536 = vmatprep.subr.bf16.mxu0 0
        %537 = vmatpush1.bf16.msra.mxu0 0
        %538 = vmatprep.subr.bf16.mxu0 0
        %539 = vmatpush1.bf16.msra.mxu0 0
        %540 = vmatprep.subr.bf16.mxu0 0
        %541 = vmatpush1.bf16.msra.mxu0 0
        %542 = vmatprep.subr.bf16.mxu0 0
        %543 = vmatpush1.bf16.msra.mxu0 0
        %544 = vmatprep.subr.bf16.mxu0 0
        %545 = vmatpush1.bf16.msra.mxu0 0
        %546 = vmatprep.subr.bf16.mxu0 0
        %547 = vmatpush1.bf16.msra.mxu0 0
        %548 = vmatprep.subr.bf16.mxu0 0
        %549 = vmatpush1.bf16.msra.mxu0 0
        %550 = vmatprep.subr.bf16.mxu0 0
        %551 = vmatpush1.bf16.msra.mxu0 0
        %552 = vmatprep.subr.bf16.mxu0 0
        %553 = vmatpush1.bf16.msra.mxu0 0
        %554 = vmatprep.subr.bf16.mxu0 0
        %555 = vmatpush1.bf16.msra.mxu0 0
        %556 = vmatprep.mubr.bf16.mxu0 0
        %557 = vmatmul.mubr.bf16.gmra.mrb[0].mxu0 %v519
        %v558 = vpop.f32.mrb[0].mxu0
        %v559 = vadd.f32 %v490, %v558
        %v560 = vpop.f32.mrb[0].mxu0
        %v561 = vadd.f32 %v490, %v560
        %v562 = vpop.f32.mrb[0].mxu0
        %v563 = vadd.f32 %v495, %v562
        %v564 = vpop.f32.mrb[0].mxu0
        %v565 = vadd.f32 %v495, %v564
        %566 = vmatprep.mubr.bf16.mxu0 0
        %567 = vmatmul.mubr.bf16.gmra.mrb[0].mxu0 %v522
        %v568 = vpop.f32.mrb[0].mxu0
        %v569 = vadd.f32 %v500, %v568
        %v570 = vpop.f32.mrb[0].mxu0
        %v571 = vadd.f32 %v500, %v570
        %v572 = vpop.f32.mrb[0].mxu0
        %v573 = vadd.f32 %v505, %v572
        %v574 = vpop.f32.mrb[0].mxu0
        %v575 = vadd.f32 %v505, %v574
        %576 = vdwg.mxu0
        %v577 = vmul.f32 %v559, 0.2
        %v578 = vmul.f32 %v561, 0.2
        %v579 = vmul.f32 %v563, 0.2
        %v580 = vmul.f32 %v565, 0.2
        %v581 = vmul.f32 %v569, 0.2
        %v582 = vmul.f32 %v571, 0.2
        %v583 = vmul.f32 %v573, 0.2
        %v584 = vmul.f32 %v575, 0.2
        %v585 = vmax.f32 %v559, %v577
        %v586 = vmax.f32 %v561, %v578
        %v587 = vmax.f32 %v563, %v579
        %v588 = vmax.f32 %v565, %v580
        %v589 = vmax.f32 %v569, %v581
        %v590 = vmax.f32 %v571, %v582
        %v591 = vmax.f32 %v573, %v583
        %v592 = vmax.f32 %v575, %v584
        %v593 = vld [vmem:[%s5] sm:$0xff]
        %v594 = vld [vmem:[%s5 + $0x8] sm:$0xff]
        %v595 = vld [vmem:[%s5 + $0x10] sm:$0xff]
        %v596 = vld [vmem:[%s5 + $0x18] sm:$0xff]
        %598 = vset.pattern.permute.xlu0 0
        %599 = vperm.xlu0 %598, %v593
        %v600 = vpop.permute.xlu0 %599
        %603 = vset.pattern.permute.xlu0 0
        %604 = vperm.xlu0 %603, %v594
        %v605 = vpop.permute.xlu0 %604
        %608 = vset.pattern.permute.xlu0 0
        %609 = vperm.xlu0 %608, %v595
        %v610 = vpop.permute.xlu0 %609
        %613 = vset.pattern.permute.xlu0 0
        %614 = vperm.xlu0 %613, %v596
        %v615 = vpop.permute.xlu0 %614
        %v617 = vmul.f32 %v585, %v600
        %v618 = vmul.f32 %v586, %v600
        %v619 = vmul.f32 %v587, %v605
        %v620 = vmul.f32 %v588, %v605
        %v621 = vmul.f32 %v589, %v610
        %v622 = vmul.f32 %v590, %v610
        %v623 = vmul.f32 %v591, %v615
        %v624 = vmul.f32 %v592, %v615
        %v625 = vadd.f32 %v617, %v619
        %v626 = vadd.f32 %v625, %v621
        %v627 = vadd.f32 %v626, %v623
        %v628 = vrot.slane %v627, 4
        %v629 = vadd.f32 %v627, %v628
        %v630 = vrot.slane %v629, 2
        %v631 = vadd.f32 %v629, %v630
        %v632 = vrot.slane %v631, 1
        %v633 = vadd.f32 %v631, %v632
        %v634 = vadd.f32 %v618, %v620
        %v635 = vadd.f32 %v634, %v622
        %v636 = vadd.f32 %v635, %v624
        %v637 = vrot.slane %v636, 4
        %v638 = vadd.f32 %v636, %v637
        %v639 = vrot.slane %v638, 2
        %v640 = vadd.f32 %v638, %v639
        %v641 = vrot.slane %v640, 1
        %v642 = vadd.f32 %v640, %v641
        %v643 = vld [vmem:[#allocation2] sm:$0x1]
        %645 = vset.pattern.permute.xlu0 0
        %646 = vperm.xlu0 %645, %v643
        %v647 = vpop.permute.xlu0 %646
        %v649 = vlaneseq
        %v650 = vshrl.u32 %v649, 7
        %v651 = vsub.s32 0, %v650
        %v652 = vrot.slane %v647, %v651
        %v653 = vadd.f32 %v633, %v652
        %v654 = vadd.f32 %v642, %v652
        %v655 = vsub.f32 0.0, %v653
        %v656 = vsub.f32 0.0, %v654
        %v657 = vmul.f32 %v655, 1.442695
        %v658 = vpow.pop %v657
        %v659 = vmul.f32 %v656, 1.442695
        %v660 = vpow.pop %v659
        %v661 = vadd.f32 %v658, 1.0
        %v662 = vadd.f32 %v660, 1.0
        %v663 = vrcp.pop %v661
        %v664 = vrcp.pop %v662
        %v667 = vcombine.low %v663, %v664
        %v669 = vunpack.c.l.s4 1966171168
        %v670 = vunpack.c.0.s8 %v669
        %v671 = vlaneseq
        %v672 = vshrl.u32 %v671, 7
        %v673 = vsub.s32 %v670, %v672
        %v674 = vrot.slane %v667, %v673
        %v676 = vunpack.c.l.s4 1966171168
        %v677 = vunpack.c.0.s8 %v676
        %v678 = vlaneseq
        %v679 = vshrl.u32 %v678, 7
        %v680 = vsub.s32 %v677, %v679
        %v681 = vrot.slane %v674, %v680
        %v683 = vlaneseq
        %vm684 = vcmp.ge.s32.totalorder %v683, 0
        %vm685 = vcmp.lt.s32.totalorder %v683, 256
        %vm686 = vmand %vm684, %vm685
        %687 = vst.msk [vmem:[%s286] sm:$0x3] %vm686, %v681
        %s688 = sand.u32 %s188, 1
        %s689 = scalar_lea.sflag [#allocation4], %s688
        %s690 = sand.u32 %s188, 1
        %s691 = smul.addr %s690, 2
        %s692 = scalar_lea.vmem [#allocation3], %s691
        // Predicated region
        $region49: #{tpu_custom_call.1} parent=47 // pred_check
          %p693 = pneg %p198
        $region50: #{tpu_custom_call.1} parent=47 // pred_check_branch
          %695 = sbr.rel (%p693) target = $region52
        $region51: #{tpu_custom_call.1} parent=47 // pred_region
          %s696 = smul.u32 2, %s23
          %s698 = ssub.s32 32, 32
          %699 = vsyncadd %s689, %s698
          %s700 = smul.addr %s696, 16
          %s701 = scalar_lea.hbm %s7, %s700
          %s703 = sshll.u32 %s692, 4
          %s704 = int_to_ptr.vmem [resolvable:$true] %s703
          %706 = dma.vmem_to_hbm [thread:$0]  %s704, 32, %s701, %s689
        $region52: #{tpu_custom_call.1} parent=47 // pred_fallthru
          _
      $region48: #{tpu_custom_call.1} parent=5 // pred_fallthru
        _
      %p707 = scmp.le.s32.totalorder 2, %s18
      // Predicated region
      $region53: #{tpu_custom_call.1} parent=5 // pred_check
        %p708 = pneg %p707
      $region54: #{tpu_custom_call.1} parent=5 // pred_check_branch
        %710 = sbr.rel (%p708) target = $region56
      $region55: #{tpu_custom_call.1} parent=5 // pred_region
        %s711 = ssub.s32 %s18, 2
        // Predicated region
        $region57: #{tpu_custom_call.1} parent=55 // pred_check
          %p712 = pneg %p204
        $region58: #{tpu_custom_call.1} parent=55 // pred_check_branch
          %714 = sbr.rel (%p712) target = $region60
        $region59: #{tpu_custom_call.1} parent=55 // pred_region
          %s715 = sand.u32 %s189, 1
          %s716 = scalar_lea.sflag [#allocation4], %s715
          %s717 = sand.u32 %s189, 1
          %s718 = smul.addr %s717, 2
          %s719 = scalar_lea.vmem [#allocation3], %s718
          %720 = dma.done %s716, 32
        $region60: #{tpu_custom_call.1} parent=55 // pred_fallthru
          _
      $region56: #{tpu_custom_call.1} parent=5 // pred_fallthru
        _
    $region6: #{tpu_custom_call.1} parent=1 // loop_footer
      %s22 = sadd.s32 1, %s18
    $region7: #{tpu_custom_call.1} parent=1 // loop_footer_branch
      %17 = sbr.rel target = $region3
    $region8: #{tpu_custom_call.1} parent=1 // loop_exit
      _
    %721 = vsyncpa [#allocation4], 1
    %s722 = scalar_lea.sflag [#allocation4], 1
    %723 = vsyncpa %s722, 1

</llo_original>
